<compile_context>
chip_gen: v7x
topology: tpu7x:2x2x1
jax: 0.10.0
libtpu: 0.0.40
codegen_flags: <defaults>
</compile_context>

<pallas_src>
import jax
import jax.numpy as jnp
from jax.experimental import pallas as pl
from jax.experimental.pallas import tpu as pltpu


_LANES = 128
_SUBLANES = 8
_ROW_ALIGN = 16      # sublane alignment that is also safe for bf16 (16,128) tiles
_TILE_ROWS = 512     # (512,128) f32 tile = 256 KiB; x2 double-buffered = 512 KiB VMEM
_NUM_PAR = 2         # leading "parallel" grid axis (2 TCs on v7x; harmless elsewhere)
_SENTINEL = -3.0     # |sentinel - t_j| > step for every bin center t_j in [0,1]


def _round_up(x, m):
    return -(-x // m) * m


def _flatten(x):
    flat = jnp.asarray(x).reshape(-1)
    if flat.dtype != jnp.bfloat16 and flat.dtype != jnp.float32:
        flat = flat.astype(jnp.float32)
    return flat, int(flat.shape[0])


def _pad_rows(flat, n, rows):
    """Sentinel-pad `flat` (n real elements) to rows*128 and view as (rows, 128)."""
    total = rows * _LANES
    if total != n:
        flat = jnp.pad(flat, (0, total - n), constant_values=_SENTINEL)
    return flat.reshape(rows, _LANES)


def _make_kernel(step, t_size, p_rows, tile_rows, n_tiles, tiles_per_part):
    step_f = float(step)
    centers = [float(j) * step_f for j in range(t_size)]
    guard_needed = (_NUM_PAR * tiles_per_part) != n_tiles

    def kernel(sp_ref, su_ref, out_ref):
        c = pl.program_id(0)   # parallel shard (TensorCore on 2-TC chips)
        i = pl.program_id(1)   # unlabeled row-tile index within the shard

        def bin_sums(ref, rows):
            """Per-bin (8,128) partial sums over `rows` rows of `ref` (VALU only)."""
            accs = [jnp.zeros((_SUBLANES, _LANES), jnp.float32) for _ in range(t_size)]
            for g in range(rows // _SUBLANES):          # static unroll; aligned loads
                s = ref[pl.ds(g * _SUBLANES, _SUBLANES), :].astype(jnp.float32)
                for j in range(t_size):
                    # TODO(synk): for num_bins >> 8 an O(1)/element two-bin
                    # (floor + triangular weights) scheme would beat this
                    # O(t_size)/element loop, but it needs a cheap in-vreg scatter.
                    accs[j] = accs[j] + jnp.maximum(
                        jnp.float32(step_f) - jnp.abs(s - jnp.float32(centers[j])),
                        jnp.float32(0.0))
            return accs

        @pl.when(i == 0)
        def _init():
            out_ref[...] = jnp.zeros_like(out_ref)

            # Small labeled-positive set: resident block, binned once, shard 0 only.
            @pl.when(c == 0)
            def _positives():
                accs_p = bin_sums(sp_ref, p_rows)
                for j in range(t_size):
                    out_ref[0, j] = accs_p[j]

        def _unlabeled_tile():
            accs_u = bin_sums(su_ref, tile_rows)
            for j in range(t_size):
                out_ref[0, t_size + j] += accs_u[j]

        if guard_needed:
            # Skip whole shard-padding tiles (their re-read data would double count).
            @pl.when(c * tiles_per_part + i < n_tiles)
            def _():
                _unlabeled_tile()
        else:
            _unlabeled_tile()

    return kernel


def label_distribution_loss(scores_p, scores_n, prior, num_bins=1):
    """Pallas TPU implementation of LabelDistributionLoss(prior, num_bins).forward."""
    step = 1.0 / num_bins
    t_size = num_bins + 1
    frac_prior = 1.0 / (2.0 * prior)

    # 'polar' proxies (deterministic, from __init__); used only in the epilogue.
    proxy_p = jnp.zeros((t_size,), jnp.float32).at[-1].set(1.0)
    proxy_n = jnp.zeros((t_size,), jnp.float32).at[0].set(1.0)
    proxy_mix = prior * proxy_p + (1.0 - prior) * proxy_n

    # Positive set: one resident block (small labeled minibatch in DistPU usage).
    # TODO(synk): stream the positive set too if it ever becomes VMEM-sized.
    sp_flat, n_p = _flatten(scores_p)
    p_rows = max(_ROW_ALIGN, _round_up(pl.cdiv(max(n_p, 1), _LANES), _ROW_ALIGN))
    sp2d = _pad_rows(sp_flat, n_p, p_rows)

    # Unlabeled set: streamed in (tile_rows, 128) tiles; sentinel-padded tail so
    # the kernel hot loop needs no per-element masking.
    su_flat, n_u = _flatten(scores_n)
    u_rows_needed = pl.cdiv(max(n_u, 1), _LANES)
    tile_rows = min(_TILE_ROWS, _round_up(u_rows_needed, _ROW_ALIGN))
    n_tiles = pl.cdiv(u_rows_needed, tile_rows)
    tiles_per_part = pl.cdiv(n_tiles, _NUM_PAR)
    su2d = _pad_rows(su_flat, n_u, n_tiles * tile_rows)

    if _NUM_PAR * tiles_per_part == n_tiles:
        u_index_map = lambda c, i: (c * tiles_per_part + i, 0)
    else:
        # Clamp so shard-padding grid steps re-read the last real tile (their
        # contribution is skipped in-kernel with the pl.when guard).
        u_index_map = lambda c, i: (jnp.minimum(c * tiles_per_part + i, n_tiles - 1), 0)

    kernel = _make_kernel(step, t_size, p_rows, tile_rows, n_tiles, tiles_per_part)

    partials = pl.pallas_call(
        kernel,
        out_shape=jax.ShapeDtypeStruct(
            (_NUM_PAR, 2 * t_size, _SUBLANES, _LANES), jnp.float32),
        grid_spec=pltpu.PrefetchScalarGridSpec(
            num_scalar_prefetch=0,
            grid=(_NUM_PAR, tiles_per_part),
            in_specs=[
                # small positive block: constant index -> fetched once, stays resident
                pl.BlockSpec((p_rows, _LANES), lambda c, i: (0, 0)),
                # streamed unlabeled tiles
                pl.BlockSpec((tile_rows, _LANES), u_index_map),
            ],
            out_specs=pl.BlockSpec((1, 2 * t_size, _SUBLANES, _LANES),
                                   lambda c, i: (c, 0, 0, 0)),
        ),
        compiler_params=pltpu.CompilerParams(
            dimension_semantics=("parallel", "arbitrary")),
    )(sp2d, su2d)

    # Tiny epilogue: fold per-shard/per-slab partials, normalize, L1 vs proxies.
    sums = jnp.sum(partials, axis=(0, 2, 3))               # (2 * t_size,)
    loss = jnp.float32(0.0)
    if n_p > 0:                                            # empty set contributes 0
        hist_p = sums[:t_size] / (n_p * step)
        loss = loss + jnp.mean(jnp.abs(hist_p - proxy_p))
    if n_u > 0:
        hist_u = sums[t_size:] / (n_u * step)
        loss = loss + frac_prior * jnp.mean(jnp.abs(hist_u - proxy_mix))
    return loss


def _reference(scores_p, scores_n, prior, num_bins=1):
    """Plain-JAX reference mirroring the PyTorch module."""
    step = 1.0 / num_bins
    t_size = num_bins + 1
    t = jnp.arange(t_size, dtype=jnp.float32) * step

    def hist(s):
        s = jnp.asarray(s, jnp.float32).reshape(-1, 1)
        h = jnp.abs(s - t[None, :])
        h = jnp.where(h > step, 0.0, step - h)
        return h.sum(axis=0) / (s.shape[0] * step)

    proxy_p = jnp.zeros((t_size,), jnp.float32).at[-1].set(1.0)
    proxy_n = jnp.zeros((t_size,), jnp.float32).at[0].set(1.0)
    proxy_mix = prior * proxy_p + (1.0 - prior) * proxy_n

    loss = jnp.float32(0.0)
    if scores_p.size > 0:
        loss = loss + jnp.mean(jnp.abs(hist(scores_p) - proxy_p))
    if scores_n.size > 0:
        loss = loss + (1.0 / (2.0 * prior)) * jnp.mean(jnp.abs(hist(scores_n) - proxy_mix))
    return loss


if __name__ == "__main__":
    key = jax.random.PRNGKey(0)
    k1, k2, k3, k4 = jax.random.split(key, 4)

    # Case 1: module-default small shapes (sigmoid probabilities), num_bins=1.
    scores_p = jax.random.uniform(k1, (2, 64), dtype=jnp.float32)          # labeled positives
    scores_n = jax.random.uniform(k2, (2, 4, 16, 16), dtype=jnp.float32)   # unlabeled
    out1 = jax.block_until_ready(label_distribution_loss(scores_p, scores_n, 0.3, num_bins=1))
    ref1 = jax.block_until_ready(_reference(scores_p, scores_n, 0.3, num_bins=1))
    assert abs(float(out1) - float(ref1)) < 1e-4, (float(out1), float(ref1))

    # Case 2: ragged sizes -> multi-tile streaming, shard guard, sentinel tail, num_bins>1.
    scores_p2 = jax.random.uniform(k3, (3, 70), dtype=jnp.float32)
    scores_n2 = jax.random.uniform(k4, (41, 4, 31, 31), dtype=jnp.float32)
    out2 = jax.block_until_ready(label_distribution_loss(scores_p2, scores_n2, 0.4, num_bins=4))
    ref2 = jax.block_until_ready(_reference(scores_p2, scores_n2, 0.4, num_bins=4))
    assert abs(float(out2) - float(ref2)) < 1e-4, (float(out2), float(ref2))

    print("KERNEL_OK")
</pallas_src>

<mosaic_0001>
module attributes {stable_mosaic.version = 11 : i64} {
  func.func @kernel(%arg0: i32, %arg1: i32, %arg2: memref<16x128xf32, #tpu.memory_space<vmem>>, %arg3: memref<16x128xf32, #tpu.memory_space<vmem>>, %arg4: memref<1x4x8x128xf32, #tpu.memory_space<vmem>>) attributes {dimension_semantics = [#tpu.dimension_semantics<parallel>, #tpu.dimension_semantics<arbitrary>], iteration_bounds = array<i64: 2, 1>, scalar_prefetch = 0 : i64, scratch_operands = 0 : i64, tpu.core_type = #tpu.core_type<tc>, window_params = [{pipeline_mode = #tpu.pipeline_mode<synchronous>, transform_indices = @transform_0, window_bounds = array<i64: 16, 128>}, {transform_indices = @transform_1, window_bounds = array<i64: 16, 128>}, {transform_indices = @transform_2, window_bounds = array<i64: 1, 4, 8, 128>}]} {
    %c0_i32 = arith.constant 0 : i32
    %0 = arith.cmpi eq, %arg1, %c0_i32 : i32
    %1 = arith.extui %0 : i1 to i32
    %c0_i32_0 = arith.constant 0 : i32
    %2 = arith.cmpi ne, %1, %c0_i32_0 : i32
    scf.if %2 {
      %cst = arith.constant 0.000000e+00 : f32
      %8 = vector.broadcast %cst : f32 to vector<1x4x8x128xf32>
      %c0 = arith.constant 0 : index
      %c0_3 = arith.constant 0 : index
      %c0_4 = arith.constant 0 : index
      %c0_5 = arith.constant 0 : index
      %9 = vector.load %arg4[%c0, %c0_3, %c0_4, %c0_5] : memref<1x4x8x128xf32, #tpu.memory_space<vmem>>, vector<1x4x8x128xf32>
      tpu.vector_store %arg4[%c0, %c0_3, %c0_4, %c0_5], %8 {strides = array<i32>} : memref<1x4x8x128xf32, #tpu.memory_space<vmem>>, vector<1x4x8x128xf32>,
      %c0_i32_6 = arith.constant 0 : i32
      %10 = arith.cmpi eq, %arg0, %c0_i32_6 : i32
      %11 = arith.extui %10 : i1 to i32
      %c0_i32_7 = arith.constant 0 : i32
      %12 = arith.cmpi ne, %11, %c0_i32_7 : i32
      scf.if %12 {
        %cst_8 = arith.constant 0.000000e+00 : f32
        %13 = vector.broadcast %cst_8 : f32 to vector<8x128xf32>
        %cst_9 = arith.constant 0.000000e+00 : f32
        %14 = vector.broadcast %cst_9 : f32 to vector<8x128xf32>
        %c0_10 = arith.constant 0 : index
        %c0_11 = arith.constant 0 : index
        %15 = vector.load %arg2[%c0_10, %c0_11] : memref<16x128xf32, #tpu.memory_space<vmem>>, vector<8x128xf32>
        %cst_12 = arith.constant 0.000000e+00 : f32
        %16 = vector.broadcast %cst_12 : f32 to vector<8x128xf32>
        %17 = arith.subf %15, %16 : vector<8x128xf32>
        %18 = math.absf %17 : vector<8x128xf32>
        %cst_13 = arith.constant 1.000000e+00 : f32
        %19 = vector.broadcast %cst_13 : f32 to vector<8x128xf32>
        %20 = arith.subf %19, %18 : vector<8x128xf32>
        %cst_14 = arith.constant 0.000000e+00 : f32
        %21 = vector.broadcast %cst_14 : f32 to vector<8x128xf32>
        %22 = arith.maximumf %20, %21 : vector<8x128xf32>
        %23 = arith.addf %13, %22 : vector<8x128xf32>
        %cst_15 = arith.constant 1.000000e+00 : f32
        %24 = vector.broadcast %cst_15 : f32 to vector<8x128xf32>
        %25 = arith.subf %15, %24 : vector<8x128xf32>
        %26 = math.absf %25 : vector<8x128xf32>
        %cst_16 = arith.constant 1.000000e+00 : f32
        %27 = vector.broadcast %cst_16 : f32 to vector<8x128xf32>
        %28 = arith.subf %27, %26 : vector<8x128xf32>
        %cst_17 = arith.constant 0.000000e+00 : f32
        %29 = vector.broadcast %cst_17 : f32 to vector<8x128xf32>
        %30 = arith.maximumf %28, %29 : vector<8x128xf32>
        %31 = arith.addf %14, %30 : vector<8x128xf32>
        %c8 = arith.constant 8 : index
        %c0_18 = arith.constant 0 : index
        %32 = vector.load %arg2[%c8, %c0_18] : memref<16x128xf32, #tpu.memory_space<vmem>>, vector<8x128xf32>
        %cst_19 = arith.constant 0.000000e+00 : f32
        %33 = vector.broadcast %cst_19 : f32 to vector<8x128xf32>
        %34 = arith.subf %32, %33 : vector<8x128xf32>
        %35 = math.absf %34 : vector<8x128xf32>
        %cst_20 = arith.constant 1.000000e+00 : f32
        %36 = vector.broadcast %cst_20 : f32 to vector<8x128xf32>
        %37 = arith.subf %36, %35 : vector<8x128xf32>
        %cst_21 = arith.constant 0.000000e+00 : f32
        %38 = vector.broadcast %cst_21 : f32 to vector<8x128xf32>
        %39 = arith.maximumf %37, %38 : vector<8x128xf32>
        %40 = arith.addf %23, %39 : vector<8x128xf32>
        %cst_22 = arith.constant 1.000000e+00 : f32
        %41 = vector.broadcast %cst_22 : f32 to vector<8x128xf32>
        %42 = arith.subf %32, %41 : vector<8x128xf32>
        %43 = math.absf %42 : vector<8x128xf32>
        %cst_23 = arith.constant 1.000000e+00 : f32
        %44 = vector.broadcast %cst_23 : f32 to vector<8x128xf32>
        %45 = arith.subf %44, %43 : vector<8x128xf32>
        %cst_24 = arith.constant 0.000000e+00 : f32
        %46 = vector.broadcast %cst_24 : f32 to vector<8x128xf32>
        %47 = arith.maximumf %45, %46 : vector<8x128xf32>
        %48 = arith.addf %31, %47 : vector<8x128xf32>
        %c0_25 = arith.constant 0 : index
        %c0_26 = arith.constant 0 : index
        %c0_27 = arith.constant 0 : index
        %c0_28 = arith.constant 0 : index
        %49 = vector.load %arg4[%c0_25, %c0_26, %c0_27, %c0_28] : memref<1x4x8x128xf32, #tpu.memory_space<vmem>>, vector<1x1x8x128xf32>
        %50 = vector.shape_cast %49 : vector<1x1x8x128xf32> to vector<8x128xf32>
        %51 = vector.shape_cast %40 : vector<8x128xf32> to vector<1x1x8x128xf32>
        tpu.vector_store %arg4[%c0_25, %c0_26, %c0_27, %c0_28], %51 {strides = array<i32>} : memref<1x4x8x128xf32, #tpu.memory_space<vmem>>, vector<1x1x8x128xf32>,
        %c0_29 = arith.constant 0 : index
        %c1 = arith.constant 1 : index
        %c0_30 = arith.constant 0 : index
        %c0_31 = arith.constant 0 : index
        %52 = vector.load %arg4[%c0_29, %c1, %c0_30, %c0_31] : memref<1x4x8x128xf32, #tpu.memory_space<vmem>>, vector<1x1x8x128xf32>
        %53 = vector.shape_cast %52 : vector<1x1x8x128xf32> to vector<8x128xf32>
        %54 = vector.shape_cast %48 : vector<8x128xf32> to vector<1x1x8x128xf32>
        tpu.vector_store %arg4[%c0_29, %c1, %c0_30, %c0_31], %54 {strides = array<i32>} : memref<1x4x8x128xf32, #tpu.memory_space<vmem>>, vector<1x1x8x128xf32>,
      } else {
      }
    } else {
    }
    %c1_i32 = arith.constant 1 : i32
    %3 = arith.muli %arg0, %c1_i32 : i32
    %4 = arith.addi %3, %arg1 : i32
    %c1_i32_1 = arith.constant 1 : i32
    %5 = arith.cmpi slt, %4, %c1_i32_1 : i32
    %6 = arith.extui %5 : i1 to i32
    %c0_i32_2 = arith.constant 0 : i32
    %7 = arith.cmpi ne, %6, %c0_i32_2 : i32
    scf.if %7 {
      %cst = arith.constant 0.000000e+00 : f32
      %8 = vector.broadcast %cst : f32 to vector<8x128xf32>
      %cst_3 = arith.constant 0.000000e+00 : f32
      %9 = vector.broadcast %cst_3 : f32 to vector<8x128xf32>
      %c0 = arith.constant 0 : index
      %c0_4 = arith.constant 0 : index
      %10 = vector.load %arg3[%c0, %c0_4] : memref<16x128xf32, #tpu.memory_space<vmem>>, vector<8x128xf32>
      %cst_5 = arith.constant 0.000000e+00 : f32
      %11 = vector.broadcast %cst_5 : f32 to vector<8x128xf32>
      %12 = arith.subf %10, %11 : vector<8x128xf32>
      %13 = math.absf %12 : vector<8x128xf32>
      %cst_6 = arith.constant 1.000000e+00 : f32
      %14 = vector.broadcast %cst_6 : f32 to vector<8x128xf32>
      %15 = arith.subf %14, %13 : vector<8x128xf32>
      %cst_7 = arith.constant 0.000000e+00 : f32
      %16 = vector.broadcast %cst_7 : f32 to vector<8x128xf32>
      %17 = arith.maximumf %15, %16 : vector<8x128xf32>
      %18 = arith.addf %8, %17 : vector<8x128xf32>
      %cst_8 = arith.constant 1.000000e+00 : f32
      %19 = vector.broadcast %cst_8 : f32 to vector<8x128xf32>
      %20 = arith.subf %10, %19 : vector<8x128xf32>
      %21 = math.absf %20 : vector<8x128xf32>
      %cst_9 = arith.constant 1.000000e+00 : f32
      %22 = vector.broadcast %cst_9 : f32 to vector<8x128xf32>
      %23 = arith.subf %22, %21 : vector<8x128xf32>
      %cst_10 = arith.constant 0.000000e+00 : f32
      %24 = vector.broadcast %cst_10 : f32 to vector<8x128xf32>
      %25 = arith.maximumf %23, %24 : vector<8x128xf32>
      %26 = arith.addf %9, %25 : vector<8x128xf32>
      %c8 = arith.constant 8 : index
      %c0_11 = arith.constant 0 : index
      %27 = vector.load %arg3[%c8, %c0_11] : memref<16x128xf32, #tpu.memory_space<vmem>>, vector<8x128xf32>
      %cst_12 = arith.constant 0.000000e+00 : f32
      %28 = vector.broadcast %cst_12 : f32 to vector<8x128xf32>
      %29 = arith.subf %27, %28 : vector<8x128xf32>
      %30 = math.absf %29 : vector<8x128xf32>
      %cst_13 = arith.constant 1.000000e+00 : f32
      %31 = vector.broadcast %cst_13 : f32 to vector<8x128xf32>
      %32 = arith.subf %31, %30 : vector<8x128xf32>
      %cst_14 = arith.constant 0.000000e+00 : f32
      %33 = vector.broadcast %cst_14 : f32 to vector<8x128xf32>
      %34 = arith.maximumf %32, %33 : vector<8x128xf32>
      %35 = arith.addf %18, %34 : vector<8x128xf32>
      %cst_15 = arith.constant 1.000000e+00 : f32
      %36 = vector.broadcast %cst_15 : f32 to vector<8x128xf32>
      %37 = arith.subf %27, %36 : vector<8x128xf32>
      %38 = math.absf %37 : vector<8x128xf32>
      %cst_16 = arith.constant 1.000000e+00 : f32
      %39 = vector.broadcast %cst_16 : f32 to vector<8x128xf32>
      %40 = arith.subf %39, %38 : vector<8x128xf32>
      %cst_17 = arith.constant 0.000000e+00 : f32
      %41 = vector.broadcast %cst_17 : f32 to vector<8x128xf32>
      %42 = arith.maximumf %40, %41 : vector<8x128xf32>
      %43 = arith.addf %26, %42 : vector<8x128xf32>
      %c0_18 = arith.constant 0 : index
      %c2 = arith.constant 2 : index
      %c0_19 = arith.constant 0 : index
      %c0_20 = arith.constant 0 : index
      %44 = vector.load %arg4[%c0_18, %c2, %c0_19, %c0_20] : memref<1x4x8x128xf32, #tpu.memory_space<vmem>>, vector<1x1x8x128xf32>
      %45 = vector.shape_cast %44 : vector<1x1x8x128xf32> to vector<8x128xf32>
      %46 = arith.addf %45, %35 : vector<8x128xf32>
      %c0_21 = arith.constant 0 : index
      %c2_22 = arith.constant 2 : index
      %c0_23 = arith.constant 0 : index
      %c0_24 = arith.constant 0 : index
      %47 = vector.load %arg4[%c0_21, %c2_22, %c0_23, %c0_24] : memref<1x4x8x128xf32, #tpu.memory_space<vmem>>, vector<1x1x8x128xf32>
      %48 = vector.shape_cast %47 : vector<1x1x8x128xf32> to vector<8x128xf32>
      %49 = vector.shape_cast %46 : vector<8x128xf32> to vector<1x1x8x128xf32>
      tpu.vector_store %arg4[%c0_21, %c2_22, %c0_23, %c0_24], %49 {strides = array<i32>} : memref<1x4x8x128xf32, #tpu.memory_space<vmem>>, vector<1x1x8x128xf32>,
      %c0_25 = arith.constant 0 : index
      %c3 = arith.constant 3 : index
      %c0_26 = arith.constant 0 : index
      %c0_27 = arith.constant 0 : index
      %50 = vector.load %arg4[%c0_25, %c3, %c0_26, %c0_27] : memref<1x4x8x128xf32, #tpu.memory_space<vmem>>, vector<1x1x8x128xf32>
      %51 = vector.shape_cast %50 : vector<1x1x8x128xf32> to vector<8x128xf32>
      %52 = arith.addf %51, %43 : vector<8x128xf32>
      %c0_28 = arith.constant 0 : index
      %c3_29 = arith.constant 3 : index
      %c0_30 = arith.constant 0 : index
      %c0_31 = arith.constant 0 : index
      %53 = vector.load %arg4[%c0_28, %c3_29, %c0_30, %c0_31] : memref<1x4x8x128xf32, #tpu.memory_space<vmem>>, vector<1x1x8x128xf32>
      %54 = vector.shape_cast %53 : vector<1x1x8x128xf32> to vector<8x128xf32>
      %55 = vector.shape_cast %52 : vector<8x128xf32> to vector<1x1x8x128xf32>
      tpu.vector_store %arg4[%c0_28, %c3_29, %c0_30, %c0_31], %55 {strides = array<i32>} : memref<1x4x8x128xf32, #tpu.memory_space<vmem>>, vector<1x1x8x128xf32>,
    } else {
    }
    return
  }
  func.func @transform_0(%arg0: i32, %arg1: i32) -> (i32, i32) {
    %c0_i32 = arith.constant 0 : i32
    %c0_i32_0 = arith.constant 0 : i32
    %c0_i32_1 = arith.constant 0 : i32
    return %c0_i32, %c0_i32_0 : i32, i32
  }
  func.func @transform_1(%arg0: i32, %arg1: i32) -> (i32, i32) {
    %c1_i32 = arith.constant 1 : i32
    %0 = arith.muli %arg0, %c1_i32 : i32
    %1 = arith.addi %0, %arg1 : i32
    %c0_i32 = arith.constant 0 : i32
    %2 = arith.minsi %1, %c0_i32 : i32
    %c0_i32_0 = arith.constant 0 : i32
    %c0_i32_1 = arith.constant 0 : i32
    return %2, %c0_i32_0 : i32, i32
  }
  func.func @transform_2(%arg0: i32, %arg1: i32) -> (i32, i32, i32, i32) {
    %c0_i32 = arith.constant 0 : i32
    %c0_i32_0 = arith.constant 0 : i32
    %c0_i32_1 = arith.constant 0 : i32
    %c0_i32_2 = arith.constant 0 : i32
    return %arg0, %c0_i32, %c0_i32_0, %c0_i32_1 : i32, i32, i32, i32
  }
}

</mosaic_0001>

<llo_original>
// kernel: tpu_custom_call.1
$region0: #{tpu_custom_call.1}
  #allocation0 [shape = 'u32[]', space=smem, size = 0x4, offset = 0x4, fixed_abs, tag = 'smem constant byte address 0x4 - core index']
  #allocation1 [shape = 'u32[144,128]{1,0:T(1,128)}', space=vmem, size = 0x12000, scoped, tag = 'internal scratch']
  %s0 = inlined_call_operand.hbm [shape: f32[16,128], index: 0, kind: input, shape index: {}]
  %s1 = inlined_call_operand.hbm [shape: f32[16,128], index: 1, kind: input, shape index: {}]
  %s2 = inlined_call_operand.hbm [shape: f32[2,4,8,128], index: 2, kind: output, shape index: {}]
  %s3 = sld [smem:[#allocation0]]
  $region61: #{tpu_custom_call.1} parent=0
    _
  %s5 = ssub.s32 1, %s3
  %s6 = scalar_select 0, %s5, %s3
  $region1: #{tpu_custom_call.1} parent=0
    #allocation2 [shape = 'u8[8192]{0}', space=vmem, size = 0x2000, scoped, tag = 'input window, operand 0, single buffered']
    #allocation3 [shape = 's32[2]{0}', space=sflag, size = 0x8, scoped, tag = 'scoped memory for tpu_custom_call.1']
    #allocation4 [shape = 's32[2]{0}', space=sflag, size = 0x8, scoped, tag = 'scoped memory for tpu_custom_call.1']
    #allocation5 [shape = 'u8[16384]{0}', space=vmem, size = 0x4000, scoped, tag = 'input window, operand 1']
    #allocation6 [shape = 's32[2]{0}', space=sflag, size = 0x8, scoped, tag = 'scoped memory for tpu_custom_call.1']
    #allocation7 [shape = 'u8[32768]{0}', space=vmem, size = 0x8000, scoped, tag = 'output window, operand 0']
    %7 = vsyncpa [#allocation3], 0
    %8 = vsyncpa [#allocation6], 0
    %s9 = scalar_lea.sflag [#allocation6], 1
    %10 = vsyncpa %s9, 0
    %11 = vsyncpa [#allocation4], 0
    %s12 = scalar_lea.sflag [#allocation4], 1
    %13 = vsyncpa %s12, 0
    loop: start=0, step=1, limit=4
    $region2: #{tpu_custom_call.1} parent=1 // loop_pre_header
      _
    $region3: #{tpu_custom_call.1} parent=1 // loop_header
      %s15 = sphi 0, %s19
      %p16 = scmp.ge.s32.totalorder %s15, 4
      %s22 = sphi 0, %s34
      %s23 = sphi 0, %s30
      %s24 = sphi 0, %s22
      %s25 = sphi 0, %s23
      %s26 = sphi 0, %s24
      %s27 = sphi 0, %s25
      %s35 = sphi 0, %s35
      %s37 = sphi 0, %s35
      %s38 = sphi 0, %s37
      %s52 = sphi 0, %s38
      %s64 = sphi 0, %s66
      %s67 = sphi 0, %s64
      %s68 = sphi 0, %s67
      %s84 = sphi 0, %s68
      %s90 = sphi 0, %s92
      %s93 = sphi 0, %s90
      %s94 = sphi 0, %s93
      %s110 = sphi 0, %s94
    $region4: #{tpu_custom_call.1} parent=1 // loop_header_branch
      %18 = sbr.rel (%p16) target = $region8
    $region5: #{tpu_custom_call.1} parent=1 // loop_body
      %s20 = ssub.s32 %s15, 1
      %s21 = ssub.s32 %s15, 2
      %s28 = sadd.s32 1, %s23
      %p29 = scmp.ge.s32.totalorder %s28, 1
      %s30 = scalar_select %p29, 0, %s28
      %s31 = sadd.s32 1, %s22
      %s32 = scalar_select %p29, %s31, %s22
      %p33 = scmp.ge.s32.totalorder %s32, 2
      %s34 = scalar_select %p33, 0, %s32
      %s36 = sadd.s32 %s35, 1
      %p39 = scmp.eq.s32.totalorder %s15, 1
      %p40 = scmp.ne.s32.totalorder %s35, %s37
      %p41 = scmp.eq.s32.totalorder %s15, 0
      %p42 = por %p40, %p41
      %p43 = scmp.ne.s32.totalorder %s35, %s37
      %p44 = scmp.eq.s32.totalorder %s20, 1
      %p45 = por %p43, %p44
      %p46 = scmp.ne.s32.totalorder %s37, %s38
      %p47 = scmp.eq.s32.totalorder %s20, 0
      %p48 = por %p46, %p47
      %p49 = scmp.ne.s32.totalorder %s37, %s38
      %p50 = scmp.eq.s32.totalorder %s21, 1
      %p51 = por %p49, %p50
      %p53 = scmp.ne.s32.totalorder %s38, %s52
      %p54 = scmp.eq.s32.totalorder %s21, 0
      %p55 = por %p53, %p54
      %s56 = sadd.s32 %s22, %s23
      %p57 = scmp.lt.s32.totalorder %s56, 0
      %s58 = scalar_select %p57, %s56, 0
      %s59 = sadd.s32 %s34, %s30
      %p60 = scmp.lt.s32.totalorder %s59, 0
      %s61 = scalar_select %p60, %s59, 0
      %s62 = ssub.s32 %s58, %s61
      %p63 = scmp.eq.s32.totalorder %s62, 0
      %s65 = sadd.s32 %s64, 1
      %s66 = scalar_select %p63, %s64, %s65
      %p69 = pneg %p63
      %p70 = scmp.eq.s32.totalorder %s15, 1
      %p71 = por %p69, %p70
      %p72 = scmp.ne.s32.totalorder %s64, %s67
      %p73 = scmp.eq.s32.totalorder %s15, 0
      %p74 = por %p72, %p73
      %p75 = scmp.ne.s32.totalorder %s64, %s67
      %p76 = scmp.eq.s32.totalorder %s20, 1
      %p77 = por %p75, %p76
      %p78 = scmp.ne.s32.totalorder %s67, %s68
      %p79 = scmp.eq.s32.totalorder %s20, 0
      %p80 = por %p78, %p79
      %p81 = scmp.ne.s32.totalorder %s67, %s68
      %p82 = scmp.eq.s32.totalorder %s21, 1
      %p83 = por %p81, %p82
      %p85 = scmp.ne.s32.totalorder %s68, %s84
      %p86 = scmp.eq.s32.totalorder %s21, 0
      %p87 = por %p85, %p86
      %s88 = ssub.s32 %s22, %s34
      %p89 = scmp.eq.s32.totalorder %s88, 0
      %s91 = sadd.s32 %s90, 1
      %s92 = scalar_select %p89, %s90, %s91
      %p95 = pneg %p89
      %p96 = scmp.eq.s32.totalorder %s15, 1
      %p97 = por %p95, %p96
      %p98 = scmp.ne.s32.totalorder %s90, %s93
      %p99 = scmp.eq.s32.totalorder %s15, 0
      %p100 = por %p98, %p99
      %p101 = scmp.ne.s32.totalorder %s90, %s93
      %p102 = scmp.eq.s32.totalorder %s20, 1
      %p103 = por %p101, %p102
      %p104 = scmp.ne.s32.totalorder %s93, %s94
      %p105 = scmp.eq.s32.totalorder %s20, 0
      %p106 = por %p104, %p105
      %p107 = scmp.ne.s32.totalorder %s93, %s94
      %p108 = scmp.eq.s32.totalorder %s21, 1
      %p109 = por %p107, %p108
      %p111 = scmp.ne.s32.totalorder %s94, %s110
      %p112 = scmp.eq.s32.totalorder %s21, 0
      %p113 = por %p111, %p112
      %p114 = scmp.le.s32.totalorder 1, %s15
      %p115 = scmp.lt.s32.totalorder %s15, 3
      %p116 = pnand %p114, %p115
      %p117 = pneg %p116
      // Predicated region
      $region9: #{tpu_custom_call.1} parent=5 // pred_check
        _
      $region10: #{tpu_custom_call.1} parent=5 // pred_check_branch
        %119 = sbr.rel (%p116) target = $region12
      $region11: #{tpu_custom_call.1} parent=5 // pred_region
        %s120 = ssub.s32 %s15, 1
        // Predicated region
        $region13: #{tpu_custom_call.1} parent=11 // pred_check
          %p121 = pneg %p48
        $region14: #{tpu_custom_call.1} parent=11 // pred_check_branch
          %123 = sbr.rel (%p121) target = $region16
        $region15: #{tpu_custom_call.1} parent=11 // pred_region
          %s125 = ssub.s32 256, 256
          %126 = vsyncadd [#allocation3], %s125
          %s127 = sshll.u32 [#allocation2], 4
          %s128 = int_to_ptr.vmem [resolvable:$true] %s127
          %133 = dma.hbm_to_vmem [thread:$0]  %s0, 256, %s128, [#allocation3], 128, 128, 8
        $region16: #{tpu_custom_call.1} parent=11 // pred_fallthru
          _
      $region12: #{tpu_custom_call.1} parent=5 // pred_fallthru
        _
      %p134 = scmp.lt.s32.totalorder %s15, 2
      // Predicated region
      $region17: #{tpu_custom_call.1} parent=5 // pred_check
        %p135 = pneg %p134
      $region18: #{tpu_custom_call.1} parent=5 // pred_check_branch
        %137 = sbr.rel (%p135) target = $region20
      $region19: #{tpu_custom_call.1} parent=5 // pred_region
        // Predicated region
        $region21: #{tpu_custom_call.1} parent=19 // pred_check
          %p138 = pneg %p74
        $region22: #{tpu_custom_call.1} parent=19 // pred_check_branch
          %140 = sbr.rel (%p138) target = $region24
        $region23: #{tpu_custom_call.1} parent=19 // pred_region
          %s141 = sand.u32 %s64, 1
          %s142 = scalar_lea.sflag [#allocation6], %s141
          %s143 = sand.u32 %s64, 1
          %s144 = smul.addr %s143, 16
          %s145 = scalar_lea.vmem [#allocation5], %s144
          %s146 = sadd.s32 %s22, %s23
          %p147 = scmp.lt.s32.totalorder %s146, 0
          %s148 = scalar_select %p147, %s146, 0
          %s149 = smul.u32 2, %s148
          %s151 = ssub.s32 256, 256
          %152 = vsyncadd %s142, %s151
          %s153 = smul.addr %s149, 128
          %s154 = scalar_lea.hbm %s1, %s153
          %s155 = sshll.u32 %s145, 4
          %s156 = int_to_ptr.vmem [resolvable:$true] %s155
          %161 = dma.hbm_to_vmem [thread:$0]  %s154, 256, %s156, %s142, 128, 128, 8
        $region24: #{tpu_custom_call.1} parent=19 // pred_fallthru
          _
      $region20: #{tpu_custom_call.1} parent=5 // pred_fallthru
        _
      %p162 = scmp.le.s32.totalorder 1, %s15
      %p163 = scmp.lt.s32.totalorder %s15, 3
      %p164 = pnand %p162, %p163
      %p165 = pneg %p164
      // Predicated region
      $region25: #{tpu_custom_call.1} parent=5 // pred_check
        _
      $region26: #{tpu_custom_call.1} parent=5 // pred_check_branch
        %167 = sbr.rel (%p164) target = $region28
      $region27: #{tpu_custom_call.1} parent=5 // pred_region
        %s168 = ssub.s32 %s15, 1
        // Predicated region
        $region29: #{tpu_custom_call.1} parent=27 // pred_check
          %p169 = pneg %p48
        $region30: #{tpu_custom_call.1} parent=27 // pred_check_branch
          %171 = sbr.rel (%p169) target = $region32
        $region31: #{tpu_custom_call.1} parent=27 // pred_region
          %172 = dma.done [#allocation3], 256
        $region32: #{tpu_custom_call.1} parent=27 // pred_fallthru
          _
        %s173 = sand.u32 %s67, 1
        %s174 = scalar_lea.sflag [#allocation6], %s173
        %s175 = sand.u32 %s67, 1
        %s176 = smul.addr %s175, 16
        %s177 = scalar_lea.vmem [#allocation5], %s176
        // Predicated region
        $region33: #{tpu_custom_call.1} parent=27 // pred_check
          %p178 = pneg %p80
        $region34: #{tpu_custom_call.1} parent=27 // pred_check_branch
          %180 = sbr.rel (%p178) target = $region36
        $region35: #{tpu_custom_call.1} parent=27 // pred_region
          %181 = dma.done %s174, 256
        $region36: #{tpu_custom_call.1} parent=27 // pred_fallthru
          _
        %p182 = pneg %p48
        %p183 = pneg %p45
        %s184 = sand.u32 %s67, 1
        %s185 = scalar_lea.sflag [#allocation6], %s184
        %s186 = sand.u32 %s67, 1
        %s187 = smul.addr %s186, 16
        %s188 = scalar_lea.vmem [#allocation5], %s187
        %p189 = pneg %p80
        %p190 = pneg %p77
        %p191 = pneg %p106
        %p192 = pneg %p103
        %s193 = sand.u32 %s93, 1
        %s194 = scalar_lea.sflag [#allocation4], %s193
        %s195 = sand.u32 %s93, 1
        %s196 = smul.addr %s195, 32
        %s197 = scalar_lea.vmem [#allocation7], %s196
        %s198 = sadd.s32 %s24, %s25
        %p199 = scmp.lt.s32.totalorder %s198, 0
        %s200 = scalar_select %p199, %s198, 0
        %s201 = smul.u32 2, %s200
        %p202 = scmp.eq.s32.totalorder %s25, 0
        // Predicated region
        $region37: #{tpu_custom_call.1} parent=27 // pred_check
          %p203 = pneg %p202
        $region38: #{tpu_custom_call.1} parent=27 // pred_check_branch
          %205 = sbr.rel (%p203) target = $region40
        $region39: #{tpu_custom_call.1} parent=27 // pred_region
          %206 = vst [vmem:[%s197] sm:$0xff] 0.0
          %207 = vst [vmem:[%s197 + $0x8] sm:$0xff] 0.0
          %208 = vst [vmem:[%s197 + $0x10] sm:$0xff] 0.0
          %209 = vst [vmem:[%s197 + $0x18] sm:$0xff] 0.0
          %p210 = scmp.eq.s32.totalorder %s24, 0
          // Predicated region
          $region41: #{tpu_custom_call.1} parent=39 // pred_check
            %p211 = pneg %p210
          $region42: #{tpu_custom_call.1} parent=39 // pred_check_branch
            %213 = sbr.rel (%p211) target = $region44
          $region43: #{tpu_custom_call.1} parent=39 // pred_region
            %v214 = vld [vmem:[#allocation2] sm:$0xff]
            %v215 = vand.u32 2147483647, %v214
            %v216 = vsub.f32 1.0, %v215
            %v217 = vmax.f32 %v216, 0.0
            %v218 = vadd.f32 %v217, 0.0
            %v219 = vsub.f32 %v214, 1.0
            %v220 = vand.u32 2147483647, %v219
            %v221 = vsub.f32 1.0, %v220
            %v222 = vmax.f32 %v221, 0.0
            %v223 = vadd.f32 %v222, 0.0
            %v224 = vld [vmem:[#allocation2 + $0x8] sm:$0xff]
            %v225 = vand.u32 2147483647, %v224
            %v226 = vsub.f32 1.0, %v225
            %v227 = vmax.f32 %v226, 0.0
            %v228 = vadd.f32 %v218, %v227
            %v229 = vsub.f32 %v224, 1.0
            %v230 = vand.u32 2147483647, %v229
            %v231 = vsub.f32 1.0, %v230
            %v232 = vmax.f32 %v231, 0.0
            %v233 = vadd.f32 %v223, %v232
            %234 = vst [vmem:[%s197] sm:$0xff] %v228
            %s235 = scalar_lea.vmem %s197, 8 [#allocation7]
            %236 = vst [vmem:[%s235] sm:$0xff] %v233
          $region44: #{tpu_custom_call.1} parent=39 // pred_fallthru
            _
        $region40: #{tpu_custom_call.1} parent=27 // pred_fallthru
          _
        %s237 = sadd.s32 %s24, %s25
        %p238 = scmp.lt.s32.totalorder %s237, 1
        // Predicated region
        $region45: #{tpu_custom_call.1} parent=27 // pred_check
          %p239 = pneg %p238
        $region46: #{tpu_custom_call.1} parent=27 // pred_check_branch
          %241 = sbr.rel (%p239) target = $region48
        $region47: #{tpu_custom_call.1} parent=27 // pred_region
          %v242 = vld [vmem:[%s177] sm:$0xff]
          %v243 = vand.u32 2147483647, %v242
          %v244 = vsub.f32 1.0, %v243
          %v245 = vmax.f32 %v244, 0.0
          %v246 = vadd.f32 %v245, 0.0
          %v247 = vsub.f32 %v242, 1.0
          %v248 = vand.u32 2147483647, %v247
          %v249 = vsub.f32 1.0, %v248
          %v250 = vmax.f32 %v249, 0.0
          %v251 = vadd.f32 %v250, 0.0
          %v252 = vld [vmem:[%s177 + $0x8] sm:$0xff]
          %v253 = vand.u32 2147483647, %v252
          %v254 = vsub.f32 1.0, %v253
          %v255 = vmax.f32 %v254, 0.0
          %v256 = vadd.f32 %v246, %v255
          %v257 = vsub.f32 %v252, 1.0
          %v258 = vand.u32 2147483647, %v257
          %v259 = vsub.f32 1.0, %v258
          %v260 = vmax.f32 %v259, 0.0
          %v261 = vadd.f32 %v251, %v260
          %s262 = scalar_lea.vmem %s197, 16 [#allocation7]
          %v263 = vld [vmem:[%s262] sm:$0xff]
          %v264 = vadd.f32 %v263, %v256
          %265 = vst [vmem:[%s262] sm:$0xff] %v264
          %s266 = scalar_lea.vmem %s197, 24 [#allocation7]
          %v267 = vld [vmem:[%s266] sm:$0xff]
          %v268 = vadd.f32 %v267, %v261
          %269 = vst [vmem:[%s266] sm:$0xff] %v268
        $region48: #{tpu_custom_call.1} parent=27 // pred_fallthru
          _
        %s270 = sand.u32 %s93, 1
        %s271 = scalar_lea.sflag [#allocation4], %s270
        %s272 = sand.u32 %s93, 1
        %s273 = smul.addr %s272, 32
        %s274 = scalar_lea.vmem [#allocation7], %s273
        // Predicated region
        $region49: #{tpu_custom_call.1} parent=27 // pred_check
          %p275 = pneg %p103
        $region50: #{tpu_custom_call.1} parent=27 // pred_check_branch
          %277 = sbr.rel (%p275) target = $region52
        $region51: #{tpu_custom_call.1} parent=27 // pred_region
          %s279 = ssub.s32 512, 512
          %280 = vsyncadd %s271, %s279
          %s281 = smul.addr %s24, 4
          %s282 = smul.addr %s281, 128
          %s283 = scalar_lea.hbm %s2, %s282
          %s284 = sshll.u32 %s274, 4
          %s285 = int_to_ptr.vmem [resolvable:$true] %s284
          %290 = dma.vmem_to_hbm [thread:$0]  %s285, 512, %s283, %s271, 128, 128, 8
        $region52: #{tpu_custom_call.1} parent=27 // pred_fallthru
          _
      $region28: #{tpu_custom_call.1} parent=5 // pred_fallthru
        _
      %p291 = scmp.le.s32.totalorder 2, %s15
      // Predicated region
      $region53: #{tpu_custom_call.1} parent=5 // pred_check
        %p292 = pneg %p291
      $region54: #{tpu_custom_call.1} parent=5 // pred_check_branch
        %294 = sbr.rel (%p292) target = $region56
      $region55: #{tpu_custom_call.1} parent=5 // pred_region
        %s295 = ssub.s32 %s15, 2
        // Predicated region
        $region57: #{tpu_custom_call.1} parent=55 // pred_check
          %p296 = pneg %p109
        $region58: #{tpu_custom_call.1} parent=55 // pred_check_branch
          %298 = sbr.rel (%p296) target = $region60
        $region59: #{tpu_custom_call.1} parent=55 // pred_region
          %s299 = sand.u32 %s94, 1
          %s300 = scalar_lea.sflag [#allocation4], %s299
          %s301 = sand.u32 %s94, 1
          %s302 = smul.addr %s301, 32
          %s303 = scalar_lea.vmem [#allocation7], %s302
          %304 = dma.done %s300, 512
        $region60: #{tpu_custom_call.1} parent=55 // pred_fallthru
          _
      $region56: #{tpu_custom_call.1} parent=5 // pred_fallthru
        _
    $region6: #{tpu_custom_call.1} parent=1 // loop_footer
      %s19 = sadd.s32 1, %s15
    $region7: #{tpu_custom_call.1} parent=1 // loop_footer_branch
      %14 = sbr.rel target = $region3
    $region8: #{tpu_custom_call.1} parent=1 // loop_exit
      _
    %305 = vsyncpa [#allocation3], 1
    %s306 = scalar_lea.sflag [#allocation3], 1
    %307 = vsyncpa %s306, 1
    %308 = vsyncpa [#allocation6], 1
    %s309 = scalar_lea.sflag [#allocation6], 1
    %310 = vsyncpa %s309, 1
    %311 = vsyncpa [#allocation4], 1
    %s312 = scalar_lea.sflag [#allocation4], 1
    %313 = vsyncpa %s312, 1

</llo_original>
